<compile_context>
chip_gen: v7x
topology: tpu7x:2x2x1
jax: 0.10.0
libtpu: 0.0.40
codegen_flags: <defaults>
</compile_context>

<pallas_src>
import jax
import jax.numpy as jnp
from jax.experimental import pallas as pl
from jax.experimental.pallas import tpu as pltpu


def brand_conditioning_kernel(
    bp_ref,              # (TB, Dp)   bf16 brand profile tile
    ids_ref,             # (TB, 1)    int32 content-type ids
    emb_ref,             # (NTp, S)   bf16 embedding table (row-padded)
    w1_ref, b1_ref,      # (Dp, H) bf16, (1, H) f32
    w2_ref, b2_ref,      # (H, S)  bf16, (1, S) f32
    g_ref, beta_ref,     # (1, S) f32, (1, S) f32   LayerNorm affine
    w3_ref, b3_ref,      # (2S, H) bf16, (1, H) f32
    w4_ref, b4_ref,      # (H, H)  bf16, (1, H) f32
    o_ref,               # (TB, H) f32
):
    # brand_projector: Linear -> ReLU -> (Dropout: identity in eval) -> Linear
    x = bp_ref[...]                                                   # bf16
    h = jnp.dot(x, w1_ref[...], preferred_element_type=jnp.float32) + b1_ref[...]
    h = jnp.maximum(h, 0.0)                                           # f32 elementwise
    s = jnp.dot(h.astype(w2_ref.dtype), w2_ref[...],
                preferred_element_type=jnp.float32) + b2_ref[...]

    # brand_norm: LayerNorm over last dim (eps=1e-5, biased variance),
    # single-sweep statistics: mean and E[x^2] from one pass over s.
    inv_s = 1.0 / s.shape[-1]
    mean = jnp.sum(s, axis=-1, keepdims=True) * inv_s
    mean_sq = jnp.sum(s * s, axis=-1, keepdims=True) * inv_s
    var = jnp.maximum(mean_sq - mean * mean, 0.0)
    s_ln = (s - mean) * jax.lax.rsqrt(var + 1e-5)
    s_ln = s_ln * g_ref[...] + beta_ref[...]

    # content_type_embedding: gather fused as one-hot matmul against the
    # VMEM-resident (tiny) table.  Exact: one-hot is 0/1.
    ids = ids_ref[...]                                                # (TB, 1) int32
    nt = emb_ref.shape[0]
    iota = jax.lax.broadcasted_iota(jnp.int32, (ids.shape[0], nt), 1)
    onehot = (iota == ids).astype(emb_ref.dtype)                      # (TB, NTp) bf16
    ct = jnp.dot(onehot, emb_ref[...], preferred_element_type=jnp.float32)

    # conditioning_fusion: Linear(concat([s_ln, ct], -1)) -> ReLU -> Linear
    # Lane-concat (S=128-aligned halves) and a single K=2S matmul.
    c = jnp.concatenate([s_ln, ct], axis=-1).astype(w3_ref.dtype)     # (TB, 2S) bf16
    f = jnp.dot(c, w3_ref[...], preferred_element_type=jnp.float32) + b3_ref[...]
    f = jnp.maximum(f, 0.0)
    y = jnp.dot(f.astype(w4_ref.dtype), w4_ref[...],
                preferred_element_type=jnp.float32) + b4_ref[...]

    o_ref[...] = y.astype(o_ref.dtype)


def brand_conditioning_forward(brand_profile, content_type_ids, params, *, block_b=8):
    """JAX wrapper.  All matmuls, LayerNorm, ReLU and the embedding gather run
    inside one Pallas kernel; the wrapper only casts/pads and builds specs."""
    (w1, b1, w2, b2, gamma, beta, emb_table, w3, b3, w4, b4) = params

    B, Dp = brand_profile.shape
    H = w1.shape[1]
    S = w2.shape[1]
    NT = emb_table.shape[0]

    wdt = jnp.bfloat16
    # bf16 weights / activations at MXU inputs; f32 biases & LN affine.
    w1b, w2b, w3b, w4b = (w.astype(wdt) for w in (w1, w2, w3, w4))
    bp = brand_profile.astype(wdt)

    # Pad the tiny embedding table rows to a sublane multiple (>= 8).
    nt_pad = max(8, ((NT + 7) // 8) * 8)
    emb_p = jnp.zeros((nt_pad, S), wdt).at[:NT].set(emb_table.astype(wdt))

    # Batch tile / padding.  TB>=8; production batches should use TB>=256.
    TB = max(8, block_b)
    n_blocks = pl.cdiv(B, TB)
    Bp = n_blocks * TB
    ids = content_type_ids.astype(jnp.int32)
    if Bp != B:
        bp = jnp.pad(bp, ((0, Bp - B), (0, 0)))
        ids = jnp.pad(ids, (0, Bp - B))
    ids2 = ids.reshape(Bp, 1)

    row = lambda v: v.reshape(1, -1).astype(jnp.float32)
    resident = lambda shp: pl.BlockSpec(shp, lambda i: (0, 0))   # weights: stay in VMEM
    batched = lambda shp: pl.BlockSpec(shp, lambda i: (i, 0))    # activations: stream

    f32b, bf16b = 4, 2
    flops = 2 * Bp * (Dp * H + H * S + nt_pad * S + 2 * S * H + H * H)
    bytes_accessed = (
        Bp * Dp * bf16b + Bp * 1 * 4 + nt_pad * S * bf16b
        + (Dp * H + H * S + 2 * S * H + H * H) * bf16b
        + (3 * H + 3 * S) * f32b
        + Bp * H * f32b
    )
    cost = pl.CostEstimate(flops=flops, transcendentals=Bp,
                           bytes_accessed=bytes_accessed)

    out = pl.pallas_call(
        brand_conditioning_kernel,
        out_shape=jax.ShapeDtypeStruct((Bp, H), jnp.float32),
        grid=(n_blocks,),
        in_specs=[
            batched((TB, Dp)),                       # brand profile tile
            batched((TB, 1)),                        # content-type ids
            resident((nt_pad, S)),                   # embedding table
            resident((Dp, H)), resident((1, H)),     # W1, b1
            resident((H, S)), resident((1, S)),      # W2, b2
            resident((1, S)), resident((1, S)),      # gamma, beta
            resident((2 * S, H)), resident((1, H)),  # W3 (whole), b3
            resident((H, H)), resident((1, H)),      # W4, b4
        ],
        out_specs=batched((TB, H)),
        compiler_params=pltpu.CompilerParams(
            dimension_semantics=("parallel",)),
        cost_estimate=cost,
    )(
        bp, ids2, emb_p,
        w1b, row(b1), w2b, row(b2),
        row(gamma), row(beta),
        w3b, row(b3), w4b, row(b4),
    )
    return out[:B]


def reference_forward(brand_profile, content_type_ids, params):
    """Pure-JAX f32 reference of the PyTorch module forward (eval mode)."""
    (w1, b1, w2, b2, gamma, beta, emb_table, w3, b3, w4, b4) = params
    h = jnp.maximum(brand_profile @ w1 + b1, 0.0)
    s = h @ w2 + b2
    mean = jnp.mean(s, axis=-1, keepdims=True)
    var = jnp.mean((s - mean) ** 2, axis=-1, keepdims=True)
    s_ln = (s - mean) / jnp.sqrt(var + 1e-5) * gamma + beta
    e = emb_table[content_type_ids]
    c = jnp.concatenate([s_ln, e], axis=-1)
    f = jnp.maximum(c @ w3 + b3, 0.0)
    return f @ w4 + b4


if __name__ == "__main__":
    # Small shapes consistent with the module (scaled-down ContentGeneratorArgs).
    B = 16                     # batch (grid of 2 batch tiles of 8)
    BRAND_DIM = 256            # brand_profile_dim
    HIDDEN = 128               # hidden_size
    STYLE = 128                # style_conditioning_dim
    NUM_TYPES = 5              # len(content_types)

    key = jax.random.PRNGKey(0)
    keys = jax.random.split(key, 16)

    def init_w(k, shape, fan_in):
        lim = 1.0 / jnp.sqrt(fan_in)
        return jax.random.uniform(k, shape, jnp.float32, -lim, lim)

    # Parameters (Linear weights in (in, out) layout; LayerNorm affine; embedding).
    w1 = init_w(keys[0], (BRAND_DIM, HIDDEN), BRAND_DIM)
    b1 = init_w(keys[1], (HIDDEN,), BRAND_DIM)
    w2 = init_w(keys[2], (HIDDEN, STYLE), HIDDEN)
    b2 = init_w(keys[3], (STYLE,), HIDDEN)
    gamma = jnp.ones((STYLE,), jnp.float32)
    beta = jnp.zeros((STYLE,), jnp.float32)
    emb_table = jax.random.normal(keys[4], (NUM_TYPES, STYLE), jnp.float32)
    w3 = init_w(keys[5], (2 * STYLE, HIDDEN), 2 * STYLE)
    b3 = init_w(keys[6], (HIDDEN,), 2 * STYLE)
    w4 = init_w(keys[7], (HIDDEN, HIDDEN), HIDDEN)
    b4 = init_w(keys[8], (HIDDEN,), HIDDEN)

    params = (w1, b1, w2, b2, gamma, beta, emb_table, w3, b3, w4, b4)

    brand_profile = jax.random.normal(keys[9], (B, BRAND_DIM), jnp.float32)
    content_type_ids = jax.random.randint(keys[10], (B,), 0, NUM_TYPES, jnp.int32)

    out = brand_conditioning_forward(brand_profile, content_type_ids, params)
    out = jax.block_until_ready(out)

    ref = reference_forward(brand_profile, content_type_ids, params)
    assert out.shape == (B, HIDDEN)
    # bf16 weight storage => loosened tolerance vs the f32 module reference.
    assert jnp.allclose(out, ref, atol=5e-2, rtol=5e-2), (
        "mismatch vs reference; max abs diff = "
        f"{float(jnp.max(jnp.abs(out - ref)))}")

    # TODO(synk): nn.Dropout is only reproduced in eval mode (identity);
    # train-mode stochastic dropout is not implemented.
    print("KERNEL_OK")
</pallas_src>

<mosaic_0001>
module attributes {stable_mosaic.version = 11 : i64} {
  func.func @brand_conditioning_kernel(%arg0: i32, %arg1: memref<8x256xbf16, #tpu.memory_space<vmem>>, %arg2: memref<8x1xi32, #tpu.memory_space<vmem>>, %arg3: memref<8x128xbf16, #tpu.memory_space<vmem>>, %arg4: memref<256x128xbf16, #tpu.memory_space<vmem>>, %arg5: memref<1x128xf32, #tpu.memory_space<vmem>>, %arg6: memref<128x128xbf16, #tpu.memory_space<vmem>>, %arg7: memref<1x128xf32, #tpu.memory_space<vmem>>, %arg8: memref<1x128xf32, #tpu.memory_space<vmem>>, %arg9: memref<1x128xf32, #tpu.memory_space<vmem>>, %arg10: memref<256x128xbf16, #tpu.memory_space<vmem>>, %arg11: memref<1x128xf32, #tpu.memory_space<vmem>>, %arg12: memref<128x128xbf16, #tpu.memory_space<vmem>>, %arg13: memref<1x128xf32, #tpu.memory_space<vmem>>, %arg14: memref<8x128xf32, #tpu.memory_space<vmem>>) attributes {dimension_semantics = [#tpu.dimension_semantics<parallel>], iteration_bounds = array<i64: 2>, scalar_prefetch = 0 : i64, scratch_operands = 0 : i64, tpu.core_type = #tpu.core_type<tc>, window_params = [{transform_indices = @transform_0, window_bounds = array<i64: 8, 256>}, {transform_indices = @transform_1, window_bounds = array<i64: 8, 1>}, {pipeline_mode = #tpu.pipeline_mode<synchronous>, transform_indices = @transform_2, window_bounds = array<i64: 8, 128>}, {pipeline_mode = #tpu.pipeline_mode<synchronous>, transform_indices = @transform_3, window_bounds = array<i64: 256, 128>}, {pipeline_mode = #tpu.pipeline_mode<synchronous>, transform_indices = @transform_4, window_bounds = array<i64: 1, 128>}, {pipeline_mode = #tpu.pipeline_mode<synchronous>, transform_indices = @transform_5, window_bounds = array<i64: 128, 128>}, {pipeline_mode = #tpu.pipeline_mode<synchronous>, transform_indices = @transform_6, window_bounds = array<i64: 1, 128>}, {pipeline_mode = #tpu.pipeline_mode<synchronous>, transform_indices = @transform_7, window_bounds = array<i64: 1, 128>}, {pipeline_mode = #tpu.pipeline_mode<synchronous>, transform_indices = @transform_8, window_bounds = array<i64: 1, 128>}, {pipeline_mode = #tpu.pipeline_mode<synchronous>, transform_indices = @transform_9, window_bounds = array<i64: 256, 128>}, {pipeline_mode = #tpu.pipeline_mode<synchronous>, transform_indices = @transform_10, window_bounds = array<i64: 1, 128>}, {pipeline_mode = #tpu.pipeline_mode<synchronous>, transform_indices = @transform_11, window_bounds = array<i64: 128, 128>}, {pipeline_mode = #tpu.pipeline_mode<synchronous>, transform_indices = @transform_12, window_bounds = array<i64: 1, 128>}, {transform_indices = @transform_13, window_bounds = array<i64: 8, 128>}]} {
    %c0 = arith.constant 0 : index
    %c0_0 = arith.constant 0 : index
    %0 = vector.load %arg1[%c0, %c0_0] : memref<8x256xbf16, #tpu.memory_space<vmem>>, vector<8x256xbf16>
    %c0_1 = arith.constant 0 : index
    %c0_2 = arith.constant 0 : index
    %1 = vector.load %arg4[%c0_1, %c0_2] : memref<256x128xbf16, #tpu.memory_space<vmem>>, vector<256x128xbf16>
    %cst = arith.constant dense<0.000000e+00> : vector<8x128xf32>
    %2 = tpu.matmul %0, %1, %cst {dimension_numbers = #tpu.dot_dimension_numbers<[1], [0], [0], [1], [0, 0, 1, 1], [], []>} : vector<8x256xbf16>, vector<256x128xbf16>, vector<8x128xf32> -> vector<8x128xf32>
    %c0_3 = arith.constant 0 : index
    %c0_4 = arith.constant 0 : index
    %3 = vector.load %arg5[%c0_3, %c0_4] : memref<1x128xf32, #tpu.memory_space<vmem>>, vector<1x128xf32>
    %4 = vector.broadcast %3 : vector<1x128xf32> to vector<8x128xf32>
    %5 = arith.addf %2, %4 : vector<8x128xf32>
    %cst_5 = arith.constant 0.000000e+00 : f32
    %6 = vector.broadcast %cst_5 : f32 to vector<8x128xf32>
    %7 = arith.maximumf %5, %6 : vector<8x128xf32>
    %8 = arith.truncf %7 : vector<8x128xf32> to vector<8x128xbf16>
    %c0_6 = arith.constant 0 : index
    %c0_7 = arith.constant 0 : index
    %9 = vector.load %arg6[%c0_6, %c0_7] : memref<128x128xbf16, #tpu.memory_space<vmem>>, vector<128x128xbf16>
    %cst_8 = arith.constant dense<0.000000e+00> : vector<8x128xf32>
    %10 = tpu.matmul %8, %9, %cst_8 {dimension_numbers = #tpu.dot_dimension_numbers<[1], [0], [0], [1], [0, 0, 1, 1], [], []>} : vector<8x128xbf16>, vector<128x128xbf16>, vector<8x128xf32> -> vector<8x128xf32>
    %c0_9 = arith.constant 0 : index
    %c0_10 = arith.constant 0 : index
    %11 = vector.load %arg7[%c0_9, %c0_10] : memref<1x128xf32, #tpu.memory_space<vmem>>, vector<1x128xf32>
    %12 = vector.broadcast %11 : vector<1x128xf32> to vector<8x128xf32>
    %13 = arith.addf %10, %12 : vector<8x128xf32>
    %cst_11 = arith.constant dense<0.000000e+00> : vector<8xf32>
    %14 = vector.multi_reduction <add>, %13, %cst_11 [1] : vector<8x128xf32> to vector<8xf32>
    %15 = vector.shape_cast %14 : vector<8xf32> to vector<8x1xf32>
    %cst_12 = arith.constant 7.812500e-03 : f32
    %16 = vector.broadcast %cst_12 : f32 to vector<8x1xf32>
    %17 = arith.mulf %15, %16 : vector<8x1xf32>
    %18 = arith.mulf %13, %13 : vector<8x128xf32>
    %cst_13 = arith.constant dense<0.000000e+00> : vector<8xf32>
    %19 = vector.multi_reduction <add>, %18, %cst_13 [1] : vector<8x128xf32> to vector<8xf32>
    %20 = vector.shape_cast %19 : vector<8xf32> to vector<8x1xf32>
    %cst_14 = arith.constant 7.812500e-03 : f32
    %21 = vector.broadcast %cst_14 : f32 to vector<8x1xf32>
    %22 = arith.mulf %20, %21 : vector<8x1xf32>
    %23 = arith.mulf %17, %17 : vector<8x1xf32>
    %24 = arith.subf %22, %23 : vector<8x1xf32>
    %cst_15 = arith.constant 0.000000e+00 : f32
    %25 = vector.broadcast %cst_15 : f32 to vector<8x1xf32>
    %26 = arith.maximumf %24, %25 : vector<8x1xf32>
    %27 = vector.broadcast %17 : vector<8x1xf32> to vector<8x128xf32>
    %28 = arith.subf %13, %27 : vector<8x128xf32>
    %cst_16 = arith.constant 9.99999974E-6 : f32
    %29 = vector.broadcast %cst_16 : f32 to vector<8x1xf32>
    %30 = arith.addf %26, %29 : vector<8x1xf32>
    %31 = math.rsqrt %30 : vector<8x1xf32>
    %32 = vector.broadcast %31 : vector<8x1xf32> to vector<8x128xf32>
    %33 = arith.mulf %28, %32 : vector<8x128xf32>
    %c0_17 = arith.constant 0 : index
    %c0_18 = arith.constant 0 : index
    %34 = vector.load %arg8[%c0_17, %c0_18] : memref<1x128xf32, #tpu.memory_space<vmem>>, vector<1x128xf32>
    %35 = vector.broadcast %34 : vector<1x128xf32> to vector<8x128xf32>
    %36 = arith.mulf %33, %35 : vector<8x128xf32>
    %c0_19 = arith.constant 0 : index
    %c0_20 = arith.constant 0 : index
    %37 = vector.load %arg9[%c0_19, %c0_20] : memref<1x128xf32, #tpu.memory_space<vmem>>, vector<1x128xf32>
    %38 = vector.broadcast %37 : vector<1x128xf32> to vector<8x128xf32>
    %39 = arith.addf %36, %38 : vector<8x128xf32>
    %c0_21 = arith.constant 0 : index
    %c0_22 = arith.constant 0 : index
    %40 = vector.load %arg2[%c0_21, %c0_22] : memref<8x1xi32, #tpu.memory_space<vmem>>, vector<8x1xi32>
    %41 = tpu.iota {dimensions = array<i32: 1>} : vector<8x8xi32>
    %42 = vector.broadcast %40 : vector<8x1xi32> to vector<8x8xi32>
    %43 = arith.cmpi eq, %41, %42 : vector<8x8xi32>
    %44 = arith.extui %43 : vector<8x8xi1> to vector<8x8xi32>
    %45 = arith.sitofp %44 : vector<8x8xi32> to vector<8x8xf32>
    %46 = arith.truncf %45 : vector<8x8xf32> to vector<8x8xbf16>
    %c0_23 = arith.constant 0 : index
    %c0_24 = arith.constant 0 : index
    %47 = vector.load %arg3[%c0_23, %c0_24] : memref<8x128xbf16, #tpu.memory_space<vmem>>, vector<8x128xbf16>
    %cst_25 = arith.constant dense<0.000000e+00> : vector<8x128xf32>
    %48 = tpu.matmul %46, %47, %cst_25 {dimension_numbers = #tpu.dot_dimension_numbers<[1], [0], [0], [1], [0, 0, 1, 1], [], []>} : vector<8x8xbf16>, vector<8x128xbf16>, vector<8x128xf32> -> vector<8x128xf32>
    %49 = tpu.concatenate %39, %48 in 1 : vector<8x128xf32>, vector<8x128xf32> -> vector<8x256xf32>
    %50 = arith.truncf %49 : vector<8x256xf32> to vector<8x256xbf16>
    %c0_26 = arith.constant 0 : index
    %c0_27 = arith.constant 0 : index
    %51 = vector.load %arg10[%c0_26, %c0_27] : memref<256x128xbf16, #tpu.memory_space<vmem>>, vector<256x128xbf16>
    %cst_28 = arith.constant dense<0.000000e+00> : vector<8x128xf32>
    %52 = tpu.matmul %50, %51, %cst_28 {dimension_numbers = #tpu.dot_dimension_numbers<[1], [0], [0], [1], [0, 0, 1, 1], [], []>} : vector<8x256xbf16>, vector<256x128xbf16>, vector<8x128xf32> -> vector<8x128xf32>
    %c0_29 = arith.constant 0 : index
    %c0_30 = arith.constant 0 : index
    %53 = vector.load %arg11[%c0_29, %c0_30] : memref<1x128xf32, #tpu.memory_space<vmem>>, vector<1x128xf32>
    %54 = vector.broadcast %53 : vector<1x128xf32> to vector<8x128xf32>
    %55 = arith.addf %52, %54 : vector<8x128xf32>
    %cst_31 = arith.constant 0.000000e+00 : f32
    %56 = vector.broadcast %cst_31 : f32 to vector<8x128xf32>
    %57 = arith.maximumf %55, %56 : vector<8x128xf32>
    %58 = arith.truncf %57 : vector<8x128xf32> to vector<8x128xbf16>
    %c0_32 = arith.constant 0 : index
    %c0_33 = arith.constant 0 : index
    %59 = vector.load %arg12[%c0_32, %c0_33] : memref<128x128xbf16, #tpu.memory_space<vmem>>, vector<128x128xbf16>
    %cst_34 = arith.constant dense<0.000000e+00> : vector<8x128xf32>
    %60 = tpu.matmul %58, %59, %cst_34 {dimension_numbers = #tpu.dot_dimension_numbers<[1], [0], [0], [1], [0, 0, 1, 1], [], []>} : vector<8x128xbf16>, vector<128x128xbf16>, vector<8x128xf32> -> vector<8x128xf32>
    %c0_35 = arith.constant 0 : index
    %c0_36 = arith.constant 0 : index
    %61 = vector.load %arg13[%c0_35, %c0_36] : memref<1x128xf32, #tpu.memory_space<vmem>>, vector<1x128xf32>
    %62 = vector.broadcast %61 : vector<1x128xf32> to vector<8x128xf32>
    %63 = arith.addf %60, %62 : vector<8x128xf32>
    %c0_37 = arith.constant 0 : index
    %c0_38 = arith.constant 0 : index
    %64 = vector.load %arg14[%c0_37, %c0_38] : memref<8x128xf32, #tpu.memory_space<vmem>>, vector<8x128xf32>
    tpu.vector_store %arg14[%c0_37, %c0_38], %63 {strides = array<i32>} : memref<8x128xf32, #tpu.memory_space<vmem>>, vector<8x128xf32>,
    return
  }
  func.func @transform_0(%arg0: i32) -> (i32, i32) {
    %c0_i32 = arith.constant 0 : i32
    %c0_i32_0 = arith.constant 0 : i32
    return %arg0, %c0_i32 : i32, i32
  }
  func.func @transform_1(%arg0: i32) -> (i32, i32) {
    %c0_i32 = arith.constant 0 : i32
    %c0_i32_0 = arith.constant 0 : i32
    return %arg0, %c0_i32 : i32, i32
  }
  func.func @transform_2(%arg0: i32) -> (i32, i32) {
    %c0_i32 = arith.constant 0 : i32
    %c0_i32_0 = arith.constant 0 : i32
    %c0_i32_1 = arith.constant 0 : i32
    return %c0_i32, %c0_i32_0 : i32, i32
  }
  func.func @transform_3(%arg0: i32) -> (i32, i32) {
    %c0_i32 = arith.constant 0 : i32
    %c0_i32_0 = arith.constant 0 : i32
    %c0_i32_1 = arith.constant 0 : i32
    return %c0_i32, %c0_i32_0 : i32, i32
  }
  func.func @transform_4(%arg0: i32) -> (i32, i32) {
    %c0_i32 = arith.constant 0 : i32
    %c0_i32_0 = arith.constant 0 : i32
    %c0_i32_1 = arith.constant 0 : i32
    return %c0_i32, %c0_i32_0 : i32, i32
  }
  func.func @transform_5(%arg0: i32) -> (i32, i32) {
    %c0_i32 = arith.constant 0 : i32
    %c0_i32_0 = arith.constant 0 : i32
    %c0_i32_1 = arith.constant 0 : i32
    return %c0_i32, %c0_i32_0 : i32, i32
  }
  func.func @transform_6(%arg0: i32) -> (i32, i32) {
    %c0_i32 = arith.constant 0 : i32
    %c0_i32_0 = arith.constant 0 : i32
    %c0_i32_1 = arith.constant 0 : i32
    return %c0_i32, %c0_i32_0 : i32, i32
  }
  func.func @transform_7(%arg0: i32) -> (i32, i32) {
    %c0_i32 = arith.constant 0 : i32
    %c0_i32_0 = arith.constant 0 : i32
    %c0_i32_1 = arith.constant 0 : i32
    return %c0_i32, %c0_i32_0 : i32, i32
  }
  func.func @transform_8(%arg0: i32) -> (i32, i32) {
    %c0_i32 = arith.constant 0 : i32
    %c0_i32_0 = arith.constant 0 : i32
    %c0_i32_1 = arith.constant 0 : i32
    return %c0_i32, %c0_i32_0 : i32, i32
  }
  func.func @transform_9(%arg0: i32) -> (i32, i32) {
    %c0_i32 = arith.constant 0 : i32
    %c0_i32_0 = arith.constant 0 : i32
    %c0_i32_1 = arith.constant 0 : i32
    return %c0_i32, %c0_i32_0 : i32, i32
  }
  func.func @transform_10(%arg0: i32) -> (i32, i32) {
    %c0_i32 = arith.constant 0 : i32
    %c0_i32_0 = arith.constant 0 : i32
    %c0_i32_1 = arith.constant 0 : i32
    return %c0_i32, %c0_i32_0 : i32, i32
  }
  func.func @transform_11(%arg0: i32) -> (i32, i32) {
    %c0_i32 = arith.constant 0 : i32
    %c0_i32_0 = arith.constant 0 : i32
    %c0_i32_1 = arith.constant 0 : i32
    return %c0_i32, %c0_i32_0 : i32, i32
  }
  func.func @transform_12(%arg0: i32) -> (i32, i32) {
    %c0_i32 = arith.constant 0 : i32
    %c0_i32_0 = arith.constant 0 : i32
    %c0_i32_1 = arith.constant 0 : i32
    return %c0_i32, %c0_i32_0 : i32, i32
  }
  func.func @transform_13(%arg0: i32) -> (i32, i32) {
    %c0_i32 = arith.constant 0 : i32
    %c0_i32_0 = arith.constant 0 : i32
    return %arg0, %c0_i32 : i32, i32
  }
}

</mosaic_0001>

<llo_original>
// kernel: tpu_custom_call.1
$region0: #{tpu_custom_call.1}
  #allocation0 [shape = 'u32[]', space=smem, size = 0x4, offset = 0x4, fixed_abs, tag = 'smem constant byte address 0x4 - core index']
  #allocation1 [shape = 'u32[144,128]{1,0:T(1,128)}', space=vmem, size = 0x12000, scoped, tag = 'internal scratch']
  %s0 = inlined_call_operand.vmem [shape: bf16[16,256], index: 0, kind: input, shape index: {}]
  %s1 = inlined_call_operand.vmem [shape: s32[16,1], index: 1, kind: input, shape index: {}]
  %s2 = inlined_call_operand.vmem [shape: bf16[8,128], index: 2, kind: input, shape index: {}]
  %s3 = inlined_call_operand.hbm [shape: bf16[256,128], index: 3, kind: input, shape index: {}]
  %s4 = inlined_call_operand.vmem [shape: f32[1,128], index: 4, kind: input, shape index: {}]
  %s5 = inlined_call_operand.hbm [shape: bf16[128,128], index: 5, kind: input, shape index: {}]
  %s6 = inlined_call_operand.vmem [shape: f32[1,128], index: 6, kind: input, shape index: {}]
  %s7 = inlined_call_operand.vmem [shape: f32[1,128], index: 7, kind: input, shape index: {}]
  %s8 = inlined_call_operand.vmem [shape: f32[1,128], index: 8, kind: input, shape index: {}]
  %s9 = inlined_call_operand.hbm [shape: bf16[256,128], index: 9, kind: input, shape index: {}]
  %s10 = inlined_call_operand.vmem [shape: f32[1,128], index: 10, kind: input, shape index: {}]
  %s11 = inlined_call_operand.hbm [shape: bf16[128,128], index: 11, kind: input, shape index: {}]
  %s12 = inlined_call_operand.vmem [shape: f32[1,128], index: 12, kind: input, shape index: {}]
  %s13 = inlined_call_operand.hbm [shape: f32[16,128], index: 13, kind: output, shape index: {}]
  %s14 = sld [smem:[#allocation0]]
  $region101: #{tpu_custom_call.1} parent=0
    _
  %s16 = ssub.s32 1, %s14
  %s17 = scalar_select 0, %s16, %s14
  $region1: #{tpu_custom_call.1} parent=0
    #allocation2 [shape = 'u8[65536]{0}', space=vmem, size = 0x10000, scoped, tag = 'input window, operand 3, single buffered']
    #allocation3 [shape = 's32[2]{0}', space=sflag, size = 0x8, scoped, tag = 'scoped memory for tpu_custom_call.1']
    #allocation4 [shape = 's32[2]{0}', space=sflag, size = 0x8, scoped, tag = 'scoped memory for tpu_custom_call.1']
    #allocation5 [shape = 'u8[32768]{0}', space=vmem, size = 0x8000, scoped, tag = 'input window, operand 5, single buffered']
    #allocation6 [shape = 's32[1]{0}', space=sflag, size = 0x4, scoped, tag = 'scoped memory for tpu_custom_call.1']
    #allocation7 [shape = 'u8[65536]{0}', space=vmem, size = 0x10000, scoped, tag = 'input window, operand 9, single buffered']
    #allocation8 [shape = 'u8[32768]{0}', space=vmem, size = 0x8000, scoped, tag = 'input window, operand 11, single buffered']
    #allocation9 [shape = 's32[1]{0}', space=sflag, size = 0x4, scoped, tag = 'scoped memory for tpu_custom_call.1']
    #allocation10 [shape = 'u8[8192]{0}', space=vmem, size = 0x2000, scoped, tag = 'output window, operand 0']
    %18 = vsyncpa [#allocation3], 0
    %19 = vsyncpa [#allocation6], 0
    %20 = vsyncpa [#allocation9], 0
    %21 = vsyncpa [#allocation4], 0
    %s22 = scalar_lea.sflag [#allocation4], 1
    %23 = vsyncpa %s22, 0
    loop: start=0, step=1, limit=4
    $region2: #{tpu_custom_call.1} parent=1 // loop_pre_header
      _
    $region3: #{tpu_custom_call.1} parent=1 // loop_header
      %s25 = sphi 0, %s29
      %p26 = scmp.ge.s32.totalorder %s25, 4
      %s35 = sphi 0, %s37
      %s38 = sphi 0, %s35
      %s39 = sphi 0, %s38
      %s55 = sphi 0, %s39
      %s61 = sphi 0, %s63
      %s64 = sphi 0, %s61
      %s65 = sphi 0, %s64
      %s81 = sphi 0, %s65
      %s85 = sphi 0, %s85
      %s87 = sphi 0, %s85
      %s88 = sphi 0, %s87
      %s102 = sphi 0, %s88
      %s106 = sphi 0, %s106
      %s108 = sphi 0, %s106
      %s109 = sphi 0, %s108
      %s123 = sphi 0, %s109
      %s127 = sphi 0, %s127
      %s129 = sphi 0, %s127
      %s130 = sphi 0, %s129
      %s144 = sphi 0, %s130
      %s148 = sphi 0, %s148
      %s150 = sphi 0, %s148
      %s151 = sphi 0, %s150
      %s165 = sphi 0, %s151
      %s169 = sphi 0, %s169
      %s171 = sphi 0, %s169
      %s172 = sphi 0, %s171
      %s186 = sphi 0, %s172
      %s190 = sphi 0, %s190
      %s192 = sphi 0, %s190
      %s193 = sphi 0, %s192
      %s207 = sphi 0, %s193
      %s211 = sphi 0, %s211
      %s213 = sphi 0, %s211
      %s214 = sphi 0, %s213
      %s228 = sphi 0, %s214
      %s232 = sphi 0, %s232
      %s234 = sphi 0, %s232
      %s235 = sphi 0, %s234
      %s249 = sphi 0, %s235
      %s253 = sphi 0, %s253
      %s255 = sphi 0, %s253
      %s256 = sphi 0, %s255
      %s270 = sphi 0, %s256
      %s274 = sphi 0, %s274
      %s276 = sphi 0, %s274
      %s277 = sphi 0, %s276
      %s291 = sphi 0, %s277
      %s295 = sphi 0, %s295
      %s297 = sphi 0, %s295
      %s298 = sphi 0, %s297
      %s312 = sphi 0, %s298
      %s318 = sphi 0, %s320
      %s321 = sphi 0, %s318
      %s322 = sphi 0, %s321
      %s338 = sphi 0, %s322
    $region4: #{tpu_custom_call.1} parent=1 // loop_header_branch
      %28 = sbr.rel (%p26) target = $region8
    $region5: #{tpu_custom_call.1} parent=1 // loop_body
      %s30 = ssub.s32 %s25, 1
      %s31 = ssub.s32 %s25, 2
      %s32 = sadd.s32 %s25, 1
      %s33 = ssub.s32 %s25, %s32
      %p34 = scmp.eq.s32.totalorder %s33, 0
      %s36 = sadd.s32 %s35, 1
      %s37 = scalar_select %p34, %s35, %s36
      %p40 = pneg %p34
      %p41 = scmp.eq.s32.totalorder %s25, 1
      %p42 = por %p40, %p41
      %p43 = scmp.ne.s32.totalorder %s35, %s38
      %p44 = scmp.eq.s32.totalorder %s25, 0
      %p45 = por %p43, %p44
      %p46 = scmp.ne.s32.totalorder %s35, %s38
      %p47 = scmp.eq.s32.totalorder %s30, 1
      %p48 = por %p46, %p47
      %p49 = scmp.ne.s32.totalorder %s38, %s39
      %p50 = scmp.eq.s32.totalorder %s30, 0
      %p51 = por %p49, %p50
      %p52 = scmp.ne.s32.totalorder %s38, %s39
      %p53 = scmp.eq.s32.totalorder %s31, 1
      %p54 = por %p52, %p53
      %p56 = scmp.ne.s32.totalorder %s39, %s55
      %p57 = scmp.eq.s32.totalorder %s31, 0
      %p58 = por %p56, %p57
      %s59 = ssub.s32 %s25, %s32
      %p60 = scmp.eq.s32.totalorder %s59, 0
      %s62 = sadd.s32 %s61, 1
      %s63 = scalar_select %p60, %s61, %s62
      %p66 = pneg %p60
      %p67 = scmp.eq.s32.totalorder %s25, 1
      %p68 = por %p66, %p67
      %p69 = scmp.ne.s32.totalorder %s61, %s64
      %p70 = scmp.eq.s32.totalorder %s25, 0
      %p71 = por %p69, %p70
      %p72 = scmp.ne.s32.totalorder %s61, %s64
      %p73 = scmp.eq.s32.totalorder %s30, 1
      %p74 = por %p72, %p73
      %p75 = scmp.ne.s32.totalorder %s64, %s65
      %p76 = scmp.eq.s32.totalorder %s30, 0
      %p77 = por %p75, %p76
      %p78 = scmp.ne.s32.totalorder %s64, %s65
      %p79 = scmp.eq.s32.totalorder %s31, 1
      %p80 = por %p78, %p79
      %p82 = scmp.ne.s32.totalorder %s65, %s81
      %p83 = scmp.eq.s32.totalorder %s31, 0
      %p84 = por %p82, %p83
      %s86 = sadd.s32 %s85, 1
      %p89 = scmp.eq.s32.totalorder %s25, 1
      %p90 = scmp.ne.s32.totalorder %s85, %s87
      %p91 = scmp.eq.s32.totalorder %s25, 0
      %p92 = por %p90, %p91
      %p93 = scmp.ne.s32.totalorder %s85, %s87
      %p94 = scmp.eq.s32.totalorder %s30, 1
      %p95 = por %p93, %p94
      %p96 = scmp.ne.s32.totalorder %s87, %s88
      %p97 = scmp.eq.s32.totalorder %s30, 0
      %p98 = por %p96, %p97
      %p99 = scmp.ne.s32.totalorder %s87, %s88
      %p100 = scmp.eq.s32.totalorder %s31, 1
      %p101 = por %p99, %p100
      %p103 = scmp.ne.s32.totalorder %s88, %s102
      %p104 = scmp.eq.s32.totalorder %s31, 0
      %p105 = por %p103, %p104
      %s107 = sadd.s32 %s106, 1
      %p110 = scmp.eq.s32.totalorder %s25, 1
      %p111 = scmp.ne.s32.totalorder %s106, %s108
      %p112 = scmp.eq.s32.totalorder %s25, 0
      %p113 = por %p111, %p112
      %p114 = scmp.ne.s32.totalorder %s106, %s108
      %p115 = scmp.eq.s32.totalorder %s30, 1
      %p116 = por %p114, %p115
      %p117 = scmp.ne.s32.totalorder %s108, %s109
      %p118 = scmp.eq.s32.totalorder %s30, 0
      %p119 = por %p117, %p118
      %p120 = scmp.ne.s32.totalorder %s108, %s109
      %p121 = scmp.eq.s32.totalorder %s31, 1
      %p122 = por %p120, %p121
      %p124 = scmp.ne.s32.totalorder %s109, %s123
      %p125 = scmp.eq.s32.totalorder %s31, 0
      %p126 = por %p124, %p125
      %s128 = sadd.s32 %s127, 1
      %p131 = scmp.eq.s32.totalorder %s25, 1
      %p132 = scmp.ne.s32.totalorder %s127, %s129
      %p133 = scmp.eq.s32.totalorder %s25, 0
      %p134 = por %p132, %p133
      %p135 = scmp.ne.s32.totalorder %s127, %s129
      %p136 = scmp.eq.s32.totalorder %s30, 1
      %p137 = por %p135, %p136
      %p138 = scmp.ne.s32.totalorder %s129, %s130
      %p139 = scmp.eq.s32.totalorder %s30, 0
      %p140 = por %p138, %p139
      %p141 = scmp.ne.s32.totalorder %s129, %s130
      %p142 = scmp.eq.s32.totalorder %s31, 1
      %p143 = por %p141, %p142
      %p145 = scmp.ne.s32.totalorder %s130, %s144
      %p146 = scmp.eq.s32.totalorder %s31, 0
      %p147 = por %p145, %p146
      %s149 = sadd.s32 %s148, 1
      %p152 = scmp.eq.s32.totalorder %s25, 1
      %p153 = scmp.ne.s32.totalorder %s148, %s150
      %p154 = scmp.eq.s32.totalorder %s25, 0
      %p155 = por %p153, %p154
      %p156 = scmp.ne.s32.totalorder %s148, %s150
      %p157 = scmp.eq.s32.totalorder %s30, 1
      %p158 = por %p156, %p157
      %p159 = scmp.ne.s32.totalorder %s150, %s151
      %p160 = scmp.eq.s32.totalorder %s30, 0
      %p161 = por %p159, %p160
      %p162 = scmp.ne.s32.totalorder %s150, %s151
      %p163 = scmp.eq.s32.totalorder %s31, 1
      %p164 = por %p162, %p163
      %p166 = scmp.ne.s32.totalorder %s151, %s165
      %p167 = scmp.eq.s32.totalorder %s31, 0
      %p168 = por %p166, %p167
      %s170 = sadd.s32 %s169, 1
      %p173 = scmp.eq.s32.totalorder %s25, 1
      %p174 = scmp.ne.s32.totalorder %s169, %s171
      %p175 = scmp.eq.s32.totalorder %s25, 0
      %p176 = por %p174, %p175
      %p177 = scmp.ne.s32.totalorder %s169, %s171
      %p178 = scmp.eq.s32.totalorder %s30, 1
      %p179 = por %p177, %p178
      %p180 = scmp.ne.s32.totalorder %s171, %s172
      %p181 = scmp.eq.s32.totalorder %s30, 0
      %p182 = por %p180, %p181
      %p183 = scmp.ne.s32.totalorder %s171, %s172
      %p184 = scmp.eq.s32.totalorder %s31, 1
      %p185 = por %p183, %p184
      %p187 = scmp.ne.s32.totalorder %s172, %s186
      %p188 = scmp.eq.s32.totalorder %s31, 0
      %p189 = por %p187, %p188
      %s191 = sadd.s32 %s190, 1
      %p194 = scmp.eq.s32.totalorder %s25, 1
      %p195 = scmp.ne.s32.totalorder %s190, %s192
      %p196 = scmp.eq.s32.totalorder %s25, 0
      %p197 = por %p195, %p196
      %p198 = scmp.ne.s32.totalorder %s190, %s192
      %p199 = scmp.eq.s32.totalorder %s30, 1
      %p200 = por %p198, %p199
      %p201 = scmp.ne.s32.totalorder %s192, %s193
      %p202 = scmp.eq.s32.totalorder %s30, 0
      %p203 = por %p201, %p202
      %p204 = scmp.ne.s32.totalorder %s192, %s193
      %p205 = scmp.eq.s32.totalorder %s31, 1
      %p206 = por %p204, %p205
      %p208 = scmp.ne.s32.totalorder %s193, %s207
      %p209 = scmp.eq.s32.totalorder %s31, 0
      %p210 = por %p208, %p209
      %s212 = sadd.s32 %s211, 1
      %p215 = scmp.eq.s32.totalorder %s25, 1
      %p216 = scmp.ne.s32.totalorder %s211, %s213
      %p217 = scmp.eq.s32.totalorder %s25, 0
      %p218 = por %p216, %p217
      %p219 = scmp.ne.s32.totalorder %s211, %s213
      %p220 = scmp.eq.s32.totalorder %s30, 1
      %p221 = por %p219, %p220
      %p222 = scmp.ne.s32.totalorder %s213, %s214
      %p223 = scmp.eq.s32.totalorder %s30, 0
      %p224 = por %p222, %p223
      %p225 = scmp.ne.s32.totalorder %s213, %s214
      %p226 = scmp.eq.s32.totalorder %s31, 1
      %p227 = por %p225, %p226
      %p229 = scmp.ne.s32.totalorder %s214, %s228
      %p230 = scmp.eq.s32.totalorder %s31, 0
      %p231 = por %p229, %p230
      %s233 = sadd.s32 %s232, 1
      %p236 = scmp.eq.s32.totalorder %s25, 1
      %p237 = scmp.ne.s32.totalorder %s232, %s234
      %p238 = scmp.eq.s32.totalorder %s25, 0
      %p239 = por %p237, %p238
      %p240 = scmp.ne.s32.totalorder %s232, %s234
      %p241 = scmp.eq.s32.totalorder %s30, 1
      %p242 = por %p240, %p241
      %p243 = scmp.ne.s32.totalorder %s234, %s235
      %p244 = scmp.eq.s32.totalorder %s30, 0
      %p245 = por %p243, %p244
      %p246 = scmp.ne.s32.totalorder %s234, %s235
      %p247 = scmp.eq.s32.totalorder %s31, 1
      %p248 = por %p246, %p247
      %p250 = scmp.ne.s32.totalorder %s235, %s249
      %p251 = scmp.eq.s32.totalorder %s31, 0
      %p252 = por %p250, %p251
      %s254 = sadd.s32 %s253, 1
      %p257 = scmp.eq.s32.totalorder %s25, 1
      %p258 = scmp.ne.s32.totalorder %s253, %s255
      %p259 = scmp.eq.s32.totalorder %s25, 0
      %p260 = por %p258, %p259
      %p261 = scmp.ne.s32.totalorder %s253, %s255
      %p262 = scmp.eq.s32.totalorder %s30, 1
      %p263 = por %p261, %p262
      %p264 = scmp.ne.s32.totalorder %s255, %s256
      %p265 = scmp.eq.s32.totalorder %s30, 0
      %p266 = por %p264, %p265
      %p267 = scmp.ne.s32.totalorder %s255, %s256
      %p268 = scmp.eq.s32.totalorder %s31, 1
      %p269 = por %p267, %p268
      %p271 = scmp.ne.s32.totalorder %s256, %s270
      %p272 = scmp.eq.s32.totalorder %s31, 0
      %p273 = por %p271, %p272
      %s275 = sadd.s32 %s274, 1
      %p278 = scmp.eq.s32.totalorder %s25, 1
      %p279 = scmp.ne.s32.totalorder %s274, %s276
      %p280 = scmp.eq.s32.totalorder %s25, 0
      %p281 = por %p279, %p280
      %p282 = scmp.ne.s32.totalorder %s274, %s276
      %p283 = scmp.eq.s32.totalorder %s30, 1
      %p284 = por %p282, %p283
      %p285 = scmp.ne.s32.totalorder %s276, %s277
      %p286 = scmp.eq.s32.totalorder %s30, 0
      %p287 = por %p285, %p286
      %p288 = scmp.ne.s32.totalorder %s276, %s277
      %p289 = scmp.eq.s32.totalorder %s31, 1
      %p290 = por %p288, %p289
      %p292 = scmp.ne.s32.totalorder %s277, %s291
      %p293 = scmp.eq.s32.totalorder %s31, 0
      %p294 = por %p292, %p293
      %s296 = sadd.s32 %s295, 1
      %p299 = scmp.eq.s32.totalorder %s25, 1
      %p300 = scmp.ne.s32.totalorder %s295, %s297
      %p301 = scmp.eq.s32.totalorder %s25, 0
      %p302 = por %p300, %p301
      %p303 = scmp.ne.s32.totalorder %s295, %s297
      %p304 = scmp.eq.s32.totalorder %s30, 1
      %p305 = por %p303, %p304
      %p306 = scmp.ne.s32.totalorder %s297, %s298
      %p307 = scmp.eq.s32.totalorder %s30, 0
      %p308 = por %p306, %p307
      %p309 = scmp.ne.s32.totalorder %s297, %s298
      %p310 = scmp.eq.s32.totalorder %s31, 1
      %p311 = por %p309, %p310
      %p313 = scmp.ne.s32.totalorder %s298, %s312
      %p314 = scmp.eq.s32.totalorder %s31, 0
      %p315 = por %p313, %p314
      %s316 = ssub.s32 %s25, %s32
      %p317 = scmp.eq.s32.totalorder %s316, 0
      %s319 = sadd.s32 %s318, 1
      %s320 = scalar_select %p317, %s318, %s319
      %p323 = pneg %p317
      %p324 = scmp.eq.s32.totalorder %s25, 1
      %p325 = por %p323, %p324
      %p326 = scmp.ne.s32.totalorder %s318, %s321
      %p327 = scmp.eq.s32.totalorder %s25, 0
      %p328 = por %p326, %p327
      %p329 = scmp.ne.s32.totalorder %s318, %s321
      %p330 = scmp.eq.s32.totalorder %s30, 1
      %p331 = por %p329, %p330
      %p332 = scmp.ne.s32.totalorder %s321, %s322
      %p333 = scmp.eq.s32.totalorder %s30, 0
      %p334 = por %p332, %p333
      %p335 = scmp.ne.s32.totalorder %s321, %s322
      %p336 = scmp.eq.s32.totalorder %s31, 1
      %p337 = por %p335, %p336
      %p339 = scmp.ne.s32.totalorder %s322, %s338
      %p340 = scmp.eq.s32.totalorder %s31, 0
      %p341 = por %p339, %p340
      %p342 = scmp.le.s32.totalorder 1, %s25
      %p343 = scmp.lt.s32.totalorder %s25, 3
      %p344 = pnand %p342, %p343
      %p345 = pneg %p344
      // Predicated region
      $region9: #{tpu_custom_call.1} parent=5 // pred_check
        _
      $region10: #{tpu_custom_call.1} parent=5 // pred_check_branch
        %347 = sbr.rel (%p344) target = $region12
      $region11: #{tpu_custom_call.1} parent=5 // pred_region
        %s348 = ssub.s32 %s25, 1
        // Predicated region
        $region13: #{tpu_custom_call.1} parent=11 // pred_check
          %p349 = pneg %p98
        $region14: #{tpu_custom_call.1} parent=11 // pred_check_branch
          %351 = sbr.rel (%p349) target = $region16
        $region15: #{tpu_custom_call.1} parent=11 // pred_region
          _
        $region16: #{tpu_custom_call.1} parent=11 // pred_fallthru
          _
        // Predicated region
        $region17: #{tpu_custom_call.1} parent=11 // pred_check
          %p352 = pneg %p119
        $region18: #{tpu_custom_call.1} parent=11 // pred_check_branch
          %354 = sbr.rel (%p352) target = $region20
        $region19: #{tpu_custom_call.1} parent=11 // pred_region
          %s356 = ssub.s32 2048, 2048
          %357 = vsyncadd [#allocation3], %s356
          %s358 = sshll.u32 [#allocation2], 4
          %s359 = int_to_ptr.vmem [resolvable:$true] %s358
          %364 = dma.hbm_to_vmem [thread:$0]  %s3, 2048, %s359, [#allocation3], 64, 64, 4
        $region20: #{tpu_custom_call.1} parent=11 // pred_fallthru
          _
        // Predicated region
        $region21: #{tpu_custom_call.1} parent=11 // pred_check
          %p365 = pneg %p140
        $region22: #{tpu_custom_call.1} parent=11 // pred_check_branch
          %367 = sbr.rel (%p365) target = $region24
        $region23: #{tpu_custom_call.1} parent=11 // pred_region
          _
        $region24: #{tpu_custom_call.1} parent=11 // pred_fallthru
          _
        // Predicated region
        $region25: #{tpu_custom_call.1} parent=11 // pred_check
          %p368 = pneg %p161
        $region26: #{tpu_custom_call.1} parent=11 // pred_check_branch
          %370 = sbr.rel (%p368) target = $region28
        $region27: #{tpu_custom_call.1} parent=11 // pred_region
          %s372 = ssub.s32 1024, 1024
          %373 = vsyncadd [#allocation6], %s372
          %s374 = sshll.u32 [#allocation5], 4
          %s375 = int_to_ptr.vmem [resolvable:$true] %s374
          %380 = dma.hbm_to_vmem [thread:$0]  %s5, 1024, %s375, [#allocation6], 64, 64, 4
        $region28: #{tpu_custom_call.1} parent=11 // pred_fallthru
          _
        // Predicated region
        $region29: #{tpu_custom_call.1} parent=11 // pred_check
          %p381 = pneg %p182
        $region30: #{tpu_custom_call.1} parent=11 // pred_check_branch
          %383 = sbr.rel (%p381) target = $region32
        $region31: #{tpu_custom_call.1} parent=11 // pred_region
          _
        $region32: #{tpu_custom_call.1} parent=11 // pred_fallthru
          _
        // Predicated region
        $region33: #{tpu_custom_call.1} parent=11 // pred_check
          %p384 = pneg %p203
        $region34: #{tpu_custom_call.1} parent=11 // pred_check_branch
          %386 = sbr.rel (%p384) target = $region36
        $region35: #{tpu_custom_call.1} parent=11 // pred_region
          _
        $region36: #{tpu_custom_call.1} parent=11 // pred_fallthru
          _
        // Predicated region
        $region37: #{tpu_custom_call.1} parent=11 // pred_check
          %p387 = pneg %p224
        $region38: #{tpu_custom_call.1} parent=11 // pred_check_branch
          %389 = sbr.rel (%p387) target = $region40
        $region39: #{tpu_custom_call.1} parent=11 // pred_region
          _
        $region40: #{tpu_custom_call.1} parent=11 // pred_fallthru
          _
        // Predicated region
        $region41: #{tpu_custom_call.1} parent=11 // pred_check
          %p390 = pneg %p245
        $region42: #{tpu_custom_call.1} parent=11 // pred_check_branch
          %392 = sbr.rel (%p390) target = $region44
        $region43: #{tpu_custom_call.1} parent=11 // pred_region
          %s394 = ssub.s32 2048, 2048
          %395 = vsyncadd [#allocation6], %s394
          %s396 = sshll.u32 [#allocation7], 4
          %s397 = int_to_ptr.vmem [resolvable:$true] %s396
          %402 = dma.hbm_to_vmem [thread:$0]  %s9, 2048, %s397, [#allocation6], 64, 64, 4
        $region44: #{tpu_custom_call.1} parent=11 // pred_fallthru
          _
        // Predicated region
        $region45: #{tpu_custom_call.1} parent=11 // pred_check
          %p403 = pneg %p266
        $region46: #{tpu_custom_call.1} parent=11 // pred_check_branch
          %405 = sbr.rel (%p403) target = $region48
        $region47: #{tpu_custom_call.1} parent=11 // pred_region
          _
        $region48: #{tpu_custom_call.1} parent=11 // pred_fallthru
          _
        // Predicated region
        $region49: #{tpu_custom_call.1} parent=11 // pred_check
          %p406 = pneg %p287
        $region50: #{tpu_custom_call.1} parent=11 // pred_check_branch
          %408 = sbr.rel (%p406) target = $region52
        $region51: #{tpu_custom_call.1} parent=11 // pred_region
          %s410 = ssub.s32 1024, 1024
          %411 = vsyncadd [#allocation9], %s410
          %s412 = sshll.u32 [#allocation8], 4
          %s413 = int_to_ptr.vmem [resolvable:$true] %s412
          %418 = dma.hbm_to_vmem [thread:$0]  %s11, 1024, %s413, [#allocation9], 64, 64, 4
        $region52: #{tpu_custom_call.1} parent=11 // pred_fallthru
          _
        // Predicated region
        $region53: #{tpu_custom_call.1} parent=11 // pred_check
          %p419 = pneg %p308
        $region54: #{tpu_custom_call.1} parent=11 // pred_check_branch
          %421 = sbr.rel (%p419) target = $region56
        $region55: #{tpu_custom_call.1} parent=11 // pred_region
          _
        $region56: #{tpu_custom_call.1} parent=11 // pred_fallthru
          _
      $region12: #{tpu_custom_call.1} parent=5 // pred_fallthru
        _
      %p422 = scmp.lt.s32.totalorder %s25, 2
      // Predicated region
      $region57: #{tpu_custom_call.1} parent=5 // pred_check
        %p423 = pneg %p422
      $region58: #{tpu_custom_call.1} parent=5 // pred_check_branch
        %425 = sbr.rel (%p423) target = $region60
      $region59: #{tpu_custom_call.1} parent=5 // pred_region
        // Predicated region
        $region61: #{tpu_custom_call.1} parent=59 // pred_check
          %p426 = pneg %p45
        $region62: #{tpu_custom_call.1} parent=59 // pred_check_branch
          %428 = sbr.rel (%p426) target = $region64
        $region63: #{tpu_custom_call.1} parent=59 // pred_region
          %p429 = scmp.lt.s32.totalorder %s25, 1
          %s430 = scalar_select %p429, %s25, 1
          %s431 = smul.addr %s430, 2
          %s432 = smul.addr %s431, 4
          %s433 = scalar_lea.vmem %s0, %s432
        $region64: #{tpu_custom_call.1} parent=59 // pred_fallthru
          _
        // Predicated region
        $region65: #{tpu_custom_call.1} parent=59 // pred_check
          %p434 = pneg %p71
        $region66: #{tpu_custom_call.1} parent=59 // pred_check_branch
          %436 = sbr.rel (%p434) target = $region68
        $region67: #{tpu_custom_call.1} parent=59 // pred_region
          %p437 = scmp.lt.s32.totalorder %s25, 1
          %s438 = scalar_select %p437, %s25, 1
          %s439 = smul.addr %s438, 8
          %s440 = scalar_lea.vmem %s1, %s439
        $region68: #{tpu_custom_call.1} parent=59 // pred_fallthru
          _
      $region60: #{tpu_custom_call.1} parent=5 // pred_fallthru
        _
      %p441 = scmp.le.s32.totalorder 1, %s25
      %p442 = scmp.lt.s32.totalorder %s25, 3
      %p443 = pnand %p441, %p442
      %p444 = pneg %p443
      // Predicated region
      $region69: #{tpu_custom_call.1} parent=5 // pred_check
        _
      $region70: #{tpu_custom_call.1} parent=5 // pred_check_branch
        %446 = sbr.rel (%p443) target = $region72
      $region71: #{tpu_custom_call.1} parent=5 // pred_region
        %s447 = ssub.s32 %s25, 1
        // Predicated region
        $region73: #{tpu_custom_call.1} parent=71 // pred_check
          %p448 = pneg %p119
        $region74: #{tpu_custom_call.1} parent=71 // pred_check_branch
          %450 = sbr.rel (%p448) target = $region76
        $region75: #{tpu_custom_call.1} parent=71 // pred_region
          %451 = dma.done [#allocation3], 2048
        $region76: #{tpu_custom_call.1} parent=71 // pred_fallthru
          _
        // Predicated region
        $region77: #{tpu_custom_call.1} parent=71 // pred_check
          %p452 = pneg %p161
        $region78: #{tpu_custom_call.1} parent=71 // pred_check_branch
          %454 = sbr.rel (%p452) target = $region80
        $region79: #{tpu_custom_call.1} parent=71 // pred_region
          %455 = dma.done [#allocation6], 1024
        $region80: #{tpu_custom_call.1} parent=71 // pred_fallthru
          _
        // Predicated region
        $region81: #{tpu_custom_call.1} parent=71 // pred_check
          %p456 = pneg %p245
        $region82: #{tpu_custom_call.1} parent=71 // pred_check_branch
          %458 = sbr.rel (%p456) target = $region84
        $region83: #{tpu_custom_call.1} parent=71 // pred_region
          %459 = dma.done [#allocation6], 2048
        $region84: #{tpu_custom_call.1} parent=71 // pred_fallthru
          _
        // Predicated region
        $region85: #{tpu_custom_call.1} parent=71 // pred_check
          %p460 = pneg %p287
        $region86: #{tpu_custom_call.1} parent=71 // pred_check_branch
          %462 = sbr.rel (%p460) target = $region88
        $region87: #{tpu_custom_call.1} parent=71 // pred_region
          %463 = dma.done [#allocation9], 1024
        $region88: #{tpu_custom_call.1} parent=71 // pred_fallthru
          _
        %p464 = scmp.lt.s32.totalorder %s30, 1
        %s465 = scalar_select %p464, %s30, 1
        %s466 = smul.addr %s465, 2
        %s467 = smul.addr %s466, 4
        %s468 = scalar_lea.vmem %s0, %s467
        %p469 = pneg %p51
        %p470 = pneg %p48
        %p471 = scmp.lt.s32.totalorder %s30, 1
        %s472 = scalar_select %p471, %s30, 1
        %s473 = smul.addr %s472, 8
        %s474 = scalar_lea.vmem %s1, %s473
        %p475 = pneg %p77
        %p476 = pneg %p74
        %p477 = pneg %p98
        %p478 = pneg %p95
        %p479 = pneg %p119
        %p480 = pneg %p116
        %p481 = pneg %p140
        %p482 = pneg %p137
        %p483 = pneg %p161
        %p484 = pneg %p158
        %p485 = pneg %p182
        %p486 = pneg %p179
        %p487 = pneg %p203
        %p488 = pneg %p200
        %p489 = pneg %p224
        %p490 = pneg %p221
        %p491 = pneg %p245
        %p492 = pneg %p242
        %p493 = pneg %p266
        %p494 = pneg %p263
        %p495 = pneg %p287
        %p496 = pneg %p284
        %p497 = pneg %p308
        %p498 = pneg %p305
        %p499 = pneg %p334
        %p500 = pneg %p331
        %s501 = sand.u32 %s321, 1
        %s502 = scalar_lea.sflag [#allocation4], %s501
        %s503 = sand.u32 %s321, 1
        %s504 = smul.addr %s503, 8
        %s505 = scalar_lea.vmem [#allocation10], %s504
        %p506 = scmp.lt.s32.totalorder %s30, 1
        %s507 = scalar_select %p506, %s30, 1
        %s508 = smul.addr %s507, 2
        %s509 = smul.addr %s508, 4
        %s510 = scalar_lea.vmem %s0, %s509
        %p511 = scmp.lt.s32.totalorder %s30, 1
        %s512 = scalar_select %p511, %s30, 1
        %s513 = smul.addr %s512, 8
        %s514 = scalar_lea.vmem %s1, %s513
        %v516 = vld [vmem:[%s510] sm:$0xff]
        %v517 = vld [vmem:[#allocation2] sm:$0xf]
        %v518 = vld [vmem:[#allocation2 + $0x4] sm:$0xf]
        %v519 = vld [vmem:[#allocation2 + $0x8] sm:$0xf]
        %v520 = vld [vmem:[#allocation2 + $0xc] sm:$0xf]
        %v521 = vld [vmem:[#allocation2 + $0x10] sm:$0xf]
        %v522 = vld [vmem:[#allocation2 + $0x14] sm:$0xf]
        %v523 = vld [vmem:[#allocation2 + $0x18] sm:$0xf]
        %v524 = vld [vmem:[#allocation2 + $0x1c] sm:$0xf]
        %v525 = vld [vmem:[#allocation2 + $0x20] sm:$0xf]
        %v526 = vld [vmem:[#allocation2 + $0x24] sm:$0xf]
        %v527 = vld [vmem:[#allocation2 + $0x28] sm:$0xf]
        %v528 = vld [vmem:[#allocation2 + $0x2c] sm:$0xf]
        %v529 = vld [vmem:[#allocation2 + $0x30] sm:$0xf]
        %v530 = vld [vmem:[#allocation2 + $0x34] sm:$0xf]
        %v531 = vld [vmem:[#allocation2 + $0x38] sm:$0xf]
        %v532 = vld [vmem:[#allocation2 + $0x3c] sm:$0xf]
        %v533 = vld [vmem:[#allocation2 + $0x40] sm:$0xf]
        %v534 = vld [vmem:[#allocation2 + $0x44] sm:$0xf]
        %v535 = vld [vmem:[#allocation2 + $0x48] sm:$0xf]
        %v536 = vld [vmem:[#allocation2 + $0x4c] sm:$0xf]
        %v537 = vld [vmem:[#allocation2 + $0x50] sm:$0xf]
        %v538 = vld [vmem:[#allocation2 + $0x54] sm:$0xf]
        %v539 = vld [vmem:[#allocation2 + $0x58] sm:$0xf]
        %v540 = vld [vmem:[#allocation2 + $0x5c] sm:$0xf]
        %v541 = vld [vmem:[#allocation2 + $0x60] sm:$0xf]
        %v542 = vld [vmem:[#allocation2 + $0x64] sm:$0xf]
        %v543 = vld [vmem:[#allocation2 + $0x68] sm:$0xf]
        %v544 = vld [vmem:[#allocation2 + $0x6c] sm:$0xf]
        %v545 = vld [vmem:[#allocation2 + $0x70] sm:$0xf]
        %v546 = vld [vmem:[#allocation2 + $0x74] sm:$0xf]
        %v547 = vld [vmem:[#allocation2 + $0x78] sm:$0xf]
        %v548 = vld [vmem:[#allocation2 + $0x7c] sm:$0xf]
        %v549 = vld [vmem:[%s4] sm:$0x1]
        %v551 = vlaneseq
        %v552 = vshrl.u32 %v551, 7
        %v553 = vsub.s32 0, %v552
        %v554 = vrot.slane %v549, %v553
        %v557 = vunpack.c.l.b16 %v516
        %v558 = vunpack.c.h.b16 %v516
        %v559 = vpack.c.b16 %v557, %v557
        %v560 = vpack.c.b16 %v558, %v558
        %v595 = vunpack.c.l.b16 %v517
        %v596 = vunpack.c.l.b16 %v518
        %v597 = vunpack.c.l.b16 %v519
        %v598 = vunpack.c.l.b16 %v520
        %v599 = vunpack.c.l.b16 %v521
        %v600 = vunpack.c.l.b16 %v522
        %v601 = vunpack.c.l.b16 %v523
        %v602 = vunpack.c.l.b16 %v524
        %v603 = vunpack.c.l.b16 %v525
        %v604 = vunpack.c.l.b16 %v526
        %v605 = vunpack.c.l.b16 %v527
        %v606 = vunpack.c.l.b16 %v528
        %v607 = vunpack.c.l.b16 %v529
        %v608 = vunpack.c.l.b16 %v530
        %v609 = vunpack.c.l.b16 %v531
        %v610 = vunpack.c.l.b16 %v532
        %v611 = vunpack.c.l.b16 %v533
        %v612 = vunpack.c.l.b16 %v534
        %v613 = vunpack.c.l.b16 %v535
        %v614 = vunpack.c.l.b16 %v536
        %v615 = vunpack.c.l.b16 %v537
        %v616 = vunpack.c.l.b16 %v538
        %v617 = vunpack.c.l.b16 %v539
        %v618 = vunpack.c.l.b16 %v540
        %v619 = vunpack.c.l.b16 %v541
        %v620 = vunpack.c.l.b16 %v542
        %v621 = vunpack.c.l.b16 %v543
        %v622 = vunpack.c.l.b16 %v544
        %v623 = vunpack.c.l.b16 %v545
        %v624 = vunpack.c.l.b16 %v546
        %v625 = vunpack.c.l.b16 %v547
        %v626 = vunpack.c.l.b16 %v548
        %v627 = vpack.c.b16 %v596, %v595
        %v628 = vpack.c.b16 %v598, %v597
        %v629 = vpack.c.b16 %v600, %v599
        %v630 = vpack.c.b16 %v602, %v601
        %v631 = vpack.c.b16 %v604, %v603
        %v632 = vpack.c.b16 %v606, %v605
        %v633 = vpack.c.b16 %v608, %v607
        %v634 = vpack.c.b16 %v610, %v609
        %v635 = vpack.c.b16 %v612, %v611
        %v636 = vpack.c.b16 %v614, %v613
        %v637 = vpack.c.b16 %v616, %v615
        %v638 = vpack.c.b16 %v618, %v617
        %v639 = vpack.c.b16 %v620, %v619
        %v640 = vpack.c.b16 %v622, %v621
        %v641 = vpack.c.b16 %v624, %v623
        %v642 = vpack.c.b16 %v626, %v625
        %659 = vmatprep.subr.bf16.mxu0 0
        %660 = vmatpush1.bf16.msra.mxu0 %v627
        %661 = vmatprep.subr.bf16.mxu0 0
        %662 = vmatpush1.bf16.msra.mxu0 %v628
        %663 = vmatprep.subr.bf16.mxu0 0
        %664 = vmatpush1.bf16.msra.mxu0 %v629
        %665 = vmatprep.subr.bf16.mxu0 0
        %666 = vmatpush1.bf16.msra.mxu0 %v630
        %667 = vmatprep.subr.bf16.mxu0 0
        %668 = vmatpush1.bf16.msra.mxu0 %v631
        %669 = vmatprep.subr.bf16.mxu0 0
        %670 = vmatpush1.bf16.msra.mxu0 %v632
        %671 = vmatprep.subr.bf16.mxu0 0
        %672 = vmatpush1.bf16.msra.mxu0 %v633
        %673 = vmatprep.subr.bf16.mxu0 0
        %674 = vmatpush1.bf16.msra.mxu0 %v634
        %675 = vmatprep.subr.bf16.mxu0 0
        %676 = vmatpush1.bf16.msra.mxu0 %v635
        %677 = vmatprep.subr.bf16.mxu0 0
        %678 = vmatpush1.bf16.msra.mxu0 %v636
        %679 = vmatprep.subr.bf16.mxu0 0
        %680 = vmatpush1.bf16.msra.mxu0 %v637
        %681 = vmatprep.subr.bf16.mxu0 0
        %682 = vmatpush1.bf16.msra.mxu0 %v638
        %683 = vmatprep.subr.bf16.mxu0 0
        %684 = vmatpush1.bf16.msra.mxu0 %v639
        %685 = vmatprep.subr.bf16.mxu0 0
        %686 = vmatpush1.bf16.msra.mxu0 %v640
        %687 = vmatprep.subr.bf16.mxu0 0
        %688 = vmatpush1.bf16.msra.mxu0 %v641
        %689 = vmatprep.subr.bf16.mxu0 0
        %690 = vmatpush1.bf16.msra.mxu0 %v642
        %691 = vmatprep.mubr.bf16.mxu0 %v560
        %692 = vmatmul.mubr.bf16.gmra.mrb[0].mxu0 %v559
        %v693 = vpop.f32.mrb[0].mxu0
        %v694 = vadd.f32 %v554, %v693
        %v695 = vpop.f32.mrb[0].mxu0
        %v696 = vpop.f32.mrb[0].mxu0
        %v697 = vpop.f32.mrb[0].mxu0
        %698 = vdwg.mxu0
        %v699 = vmax.f32 %v694, 0.0
        %v700 = vpack.c.bf16 %v699, %v699
        %v701 = vld [vmem:[#allocation5] sm:$0xf]
        %v702 = vld [vmem:[#allocation5 + $0x4] sm:$0xf]
        %v703 = vld [vmem:[#allocation5 + $0x8] sm:$0xf]
        %v704 = vld [vmem:[#allocation5 + $0xc] sm:$0xf]
        %v705 = vld [vmem:[#allocation5 + $0x10] sm:$0xf]
        %v706 = vld [vmem:[#allocation5 + $0x14] sm:$0xf]
        %v707 = vld [vmem:[#allocation5 + $0x18] sm:$0xf]
        %v708 = vld [vmem:[#allocation5 + $0x1c] sm:$0xf]
        %v709 = vld [vmem:[#allocation5 + $0x20] sm:$0xf]
        %v710 = vld [vmem:[#allocation5 + $0x24] sm:$0xf]
        %v711 = vld [vmem:[#allocation5 + $0x28] sm:$0xf]
        %v712 = vld [vmem:[#allocation5 + $0x2c] sm:$0xf]
        %v713 = vld [vmem:[#allocation5 + $0x30] sm:$0xf]
        %v714 = vld [vmem:[#allocation5 + $0x34] sm:$0xf]
        %v715 = vld [vmem:[#allocation5 + $0x38] sm:$0xf]
        %v716 = vld [vmem:[#allocation5 + $0x3c] sm:$0xf]
        %v717 = vld [vmem:[%s6] sm:$0x1]
        %v719 = vlaneseq
        %v720 = vshrl.u32 %v719, 7
        %v721 = vsub.s32 0, %v720
        %v722 = vrot.slane %v717, %v721
        %v740 = vunpack.c.l.b16 %v701
        %v741 = vunpack.c.l.b16 %v702
        %v742 = vunpack.c.l.b16 %v703
        %v743 = vunpack.c.l.b16 %v704
        %v744 = vunpack.c.l.b16 %v705
        %v745 = vunpack.c.l.b16 %v706
        %v746 = vunpack.c.l.b16 %v707
        %v747 = vunpack.c.l.b16 %v708
        %v748 = vunpack.c.l.b16 %v709
        %v749 = vunpack.c.l.b16 %v710
        %v750 = vunpack.c.l.b16 %v711
        %v751 = vunpack.c.l.b16 %v712
        %v752 = vunpack.c.l.b16 %v713
        %v753 = vunpack.c.l.b16 %v714
        %v754 = vunpack.c.l.b16 %v715
        %v755 = vunpack.c.l.b16 %v716
        %v756 = vpack.c.b16 %v741, %v740
        %v757 = vpack.c.b16 %v743, %v742
        %v758 = vpack.c.b16 %v745, %v744
        %v759 = vpack.c.b16 %v747, %v746
        %v760 = vpack.c.b16 %v749, %v748
        %v761 = vpack.c.b16 %v751, %v750
        %v762 = vpack.c.b16 %v753, %v752
        %v763 = vpack.c.b16 %v755, %v754
        %772 = vmatprep.subr.bf16.mxu0 0
        %773 = vmatpush1.bf16.msra.mxu0 %v756
        %774 = vmatprep.subr.bf16.mxu0 0
        %775 = vmatpush1.bf16.msra.mxu0 %v757
        %776 = vmatprep.subr.bf16.mxu0 0
        %777 = vmatpush1.bf16.msra.mxu0 %v758
        %778 = vmatprep.subr.bf16.mxu0 0
        %779 = vmatpush1.bf16.msra.mxu0 %v759
        %780 = vmatprep.subr.bf16.mxu0 0
        %781 = vmatpush1.bf16.msra.mxu0 %v760
        %782 = vmatprep.subr.bf16.mxu0 0
        %783 = vmatpush1.bf16.msra.mxu0 %v761
        %784 = vmatprep.subr.bf16.mxu0 0
        %785 = vmatpush1.bf16.msra.mxu0 %v762
        %786 = vmatprep.subr.bf16.mxu0 0
        %787 = vmatpush1.bf16.msra.mxu0 %v763
        %788 = vmatprep.subr.bf16.mxu0 0
        %789 = vmatpush1.bf16.msra.mxu0 0
        %790 = vmatprep.subr.bf16.mxu0 0
        %791 = vmatpush1.bf16.msra.mxu0 0
        %792 = vmatprep.subr.bf16.mxu0 0
        %793 = vmatpush1.bf16.msra.mxu0 0
        %794 = vmatprep.subr.bf16.mxu0 0
        %795 = vmatpush1.bf16.msra.mxu0 0
        %796 = vmatprep.subr.bf16.mxu0 0
        %797 = vmatpush1.bf16.msra.mxu0 0
        %798 = vmatprep.subr.bf16.mxu0 0
        %799 = vmatpush1.bf16.msra.mxu0 0
        %800 = vmatprep.subr.bf16.mxu0 0
        %801 = vmatpush1.bf16.msra.mxu0 0
        %802 = vmatprep.subr.bf16.mxu0 0
        %803 = vmatpush1.bf16.msra.mxu0 0
        %804 = vmatprep.mubr.bf16.mxu0 0
        %805 = vmatmul.mubr.bf16.gmra.mrb[0].mxu0 %v700
        %v806 = vpop.f32.mrb[0].mxu0
        %v807 = vadd.f32 %v722, %v806
        %v808 = vpop.f32.mrb[0].mxu0
        %v809 = vpop.f32.mrb[0].mxu0
        %v810 = vpop.f32.mrb[0].mxu0
        %811 = vdwg.mxu0
        %812 = vadd.xlane.f32.xlu0 %v807
        %v813 = vpop.xlane.xlu0 %812
        %v814 = vmul.f32 %v813, 0.0078125
        %v815 = vmul.f32 %v807, %v807
        %816 = vadd.xlane.f32.xlu0 %v815
        %v817 = vpop.xlane.xlu0 %816
        %v818 = vmul.f32 %v817, 0.0078125
        %v819 = vmul.f32 %v814, %v814
        %v820 = vsub.f32 %v818, %v819
        %v821 = vmax.f32 %v820, 0.0
        %v822 = vsub.f32 %v807, %v814
        %v823 = vadd.f32 %v821, 1e-05
        %v824 = vrsqrt.pop %v823
        %v825 = vmul.f32 %v822, %v824
        %v826 = vld [vmem:[%s7] sm:$0x1]
        %v828 = vlaneseq
        %v829 = vshrl.u32 %v828, 7
        %v830 = vsub.s32 0, %v829
        %v831 = vrot.slane %v826, %v830
        %v833 = vmul.f32 %v825, %v831
        %v834 = vld [vmem:[%s8] sm:$0x1]
        %v836 = vlaneseq
        %v837 = vshrl.u32 %v836, 7
        %v838 = vsub.s32 0, %v837
        %v839 = vrot.slane %v834, %v838
        %v841 = vadd.f32 %v833, %v839
        %v842 = vld [vmem:[%s514] sm:$0xff]
        %v843 = vlaneseq
        %v844 = vand.u32 %v843, 127
        %845 = vset.pattern.permute.xlu0 0
        %846 = vperm.xlu0 %845, %v842
        %v847 = vpop.permute.xlu0 %846
        %vm848 = vcmp.eq.s32.totalorder %v844, %v847
        %v849 = vsel %vm848, 1, 0
        %v850 = vcvt.s32.f32 %v849
        %v851 = vpack.c.bf16 %v850, %v850
        %v852 = vld [vmem:[%s2] sm:$0xf]
        %vm853 = vcmask 64512
        %v855 = vsel %vm853, %v851, 0
        %vm857 = vcmask 1043456
        %v859 = vsel %vm857, %v852, 0
        %861 = vmatprep.subr.bf16.mxu0 0
        %862 = vmatpush1.bf16.msra.mxu0 %v859
        %863 = vmatprep.subr.bf16.mxu0 0
        %864 = vmatpush1.bf16.msra.mxu0 0
        %865 = vmatprep.subr.bf16.mxu0 0
        %866 = vmatpush1.bf16.msra.mxu0 0
        %867 = vmatprep.subr.bf16.mxu0 0
        %868 = vmatpush1.bf16.msra.mxu0 0
        %869 = vmatprep.subr.bf16.mxu0 0
        %870 = vmatpush1.bf16.msra.mxu0 0
        %871 = vmatprep.subr.bf16.mxu0 0
        %872 = vmatpush1.bf16.msra.mxu0 0
        %873 = vmatprep.subr.bf16.mxu0 0
        %874 = vmatpush1.bf16.msra.mxu0 0
        %875 = vmatprep.subr.bf16.mxu0 0
        %876 = vmatpush1.bf16.msra.mxu0 0
        %877 = vmatprep.subr.bf16.mxu0 0
        %878 = vmatpush1.bf16.msra.mxu0 0
        %879 = vmatprep.subr.bf16.mxu0 0
        %880 = vmatpush1.bf16.msra.mxu0 0
        %881 = vmatprep.subr.bf16.mxu0 0
        %882 = vmatpush1.bf16.msra.mxu0 0
        %883 = vmatprep.subr.bf16.mxu0 0
        %884 = vmatpush1.bf16.msra.mxu0 0
        %885 = vmatprep.subr.bf16.mxu0 0
        %886 = vmatpush1.bf16.msra.mxu0 0
        %887 = vmatprep.subr.bf16.mxu0 0
        %888 = vmatpush1.bf16.msra.mxu0 0
        %889 = vmatprep.subr.bf16.mxu0 0
        %890 = vmatpush1.bf16.msra.mxu0 0
        %891 = vmatprep.subr.bf16.mxu0 0
        %892 = vmatpush1.bf16.msra.mxu0 0
        %893 = vmatprep.mubr.bf16.mxu0 0
        %894 = vmatmul.mubr.bf16.gmra.mrb[0].mxu0 %v855
        %v895 = vpop.f32.mrb[0].mxu0
        %v896 = vadd.f32 0.0, %v895
        %v897 = vpop.f32.mrb[0].mxu0
        %v898 = vpop.f32.mrb[0].mxu0
        %v899 = vpop.f32.mrb[0].mxu0
        %900 = vdwg.mxu0
        %v901 = vpack.c.bf16 %v841, %v841
        %v902 = vpack.c.bf16 %v896, %v896
        %v903 = vld [vmem:[#allocation7] sm:$0xf]
        %v904 = vld [vmem:[#allocation7 + $0x4] sm:$0xf]
        %v905 = vld [vmem:[#allocation7 + $0x8] sm:$0xf]
        %v906 = vld [vmem:[#allocation7 + $0xc] sm:$0xf]
        %v907 = vld [vmem:[#allocation7 + $0x10] sm:$0xf]
        %v908 = vld [vmem:[#allocation7 + $0x14] sm:$0xf]
        %v909 = vld [vmem:[#allocation7 + $0x18] sm:$0xf]
        %v910 = vld [vmem:[#allocation7 + $0x1c] sm:$0xf]
        %v911 = vld [vmem:[#allocation7 + $0x20] sm:$0xf]
        %v912 = vld [vmem:[#allocation7 + $0x24] sm:$0xf]
        %v913 = vld [vmem:[#allocation7 + $0x28] sm:$0xf]
        %v914 = vld [vmem:[#allocation7 + $0x2c] sm:$0xf]
        %v915 = vld [vmem:[#allocation7 + $0x30] sm:$0xf]
        %v916 = vld [vmem:[#allocation7 + $0x34] sm:$0xf]
        %v917 = vld [vmem:[#allocation7 + $0x38] sm:$0xf]
        %v918 = vld [vmem:[#allocation7 + $0x3c] sm:$0xf]
        %v919 = vld [vmem:[#allocation7 + $0x40] sm:$0xf]
        %v920 = vld [vmem:[#allocation7 + $0x44] sm:$0xf]
        %v921 = vld [vmem:[#allocation7 + $0x48] sm:$0xf]
        %v922 = vld [vmem:[#allocation7 + $0x4c] sm:$0xf]
        %v923 = vld [vmem:[#allocation7 + $0x50] sm:$0xf]
        %v924 = vld [vmem:[#allocation7 + $0x54] sm:$0xf]
        %v925 = vld [vmem:[#allocation7 + $0x58] sm:$0xf]
        %v926 = vld [vmem:[#allocation7 + $0x5c] sm:$0xf]
        %v927 = vld [vmem:[#allocation7 + $0x60] sm:$0xf]
        %v928 = vld [vmem:[#allocation7 + $0x64] sm:$0xf]
        %v929 = vld [vmem:[#allocation7 + $0x68] sm:$0xf]
        %v930 = vld [vmem:[#allocation7 + $0x6c] sm:$0xf]
        %v931 = vld [vmem:[#allocation7 + $0x70] sm:$0xf]
        %v932 = vld [vmem:[#allocation7 + $0x74] sm:$0xf]
        %v933 = vld [vmem:[#allocation7 + $0x78] sm:$0xf]
        %v934 = vld [vmem:[#allocation7 + $0x7c] sm:$0xf]
        %v935 = vld [vmem:[%s10] sm:$0x1]
        %v937 = vlaneseq
        %v938 = vshrl.u32 %v937, 7
        %v939 = vsub.s32 0, %v938
        %v940 = vrot.slane %v935, %v939
        %v974 = vunpack.c.l.b16 %v903
        %v975 = vunpack.c.l.b16 %v904
        %v976 = vunpack.c.l.b16 %v905
        %v977 = vunpack.c.l.b16 %v906
        %v978 = vunpack.c.l.b16 %v907
        %v979 = vunpack.c.l.b16 %v908
        %v980 = vunpack.c.l.b16 %v909
        %v981 = vunpack.c.l.b16 %v910
        %v982 = vunpack.c.l.b16 %v911
        %v983 = vunpack.c.l.b16 %v912
        %v984 = vunpack.c.l.b16 %v913
        %v985 = vunpack.c.l.b16 %v914
        %v986 = vunpack.c.l.b16 %v915
        %v987 = vunpack.c.l.b16 %v916
        %v988 = vunpack.c.l.b16 %v917
        %v989 = vunpack.c.l.b16 %v918
        %v990 = vunpack.c.l.b16 %v919
        %v991 = vunpack.c.l.b16 %v920
        %v992 = vunpack.c.l.b16 %v921
        %v993 = vunpack.c.l.b16 %v922
        %v994 = vunpack.c.l.b16 %v923
        %v995 = vunpack.c.l.b16 %v924
        %v996 = vunpack.c.l.b16 %v925
        %v997 = vunpack.c.l.b16 %v926
        %v998 = vunpack.c.l.b16 %v927
        %v999 = vunpack.c.l.b16 %v928
        %v1000 = vunpack.c.l.b16 %v929
        %v1001 = vunpack.c.l.b16 %v930
        %v1002 = vunpack.c.l.b16 %v931
        %v1003 = vunpack.c.l.b16 %v932
        %v1004 = vunpack.c.l.b16 %v933
        %v1005 = vunpack.c.l.b16 %v934
        %v1006 = vpack.c.b16 %v975, %v974
        %v1007 = vpack.c.b16 %v977, %v976
        %v1008 = vpack.c.b16 %v979, %v978
        %v1009 = vpack.c.b16 %v981, %v980
        %v1010 = vpack.c.b16 %v983, %v982
        %v1011 = vpack.c.b16 %v985, %v984
        %v1012 = vpack.c.b16 %v987, %v986
        %v1013 = vpack.c.b16 %v989, %v988
        %v1014 = vpack.c.b16 %v991, %v990
        %v1015 = vpack.c.b16 %v993, %v992
        %v1016 = vpack.c.b16 %v995, %v994
        %v1017 = vpack.c.b16 %v997, %v996
        %v1018 = vpack.c.b16 %v999, %v998
        %v1019 = vpack.c.b16 %v1001, %v1000
        %v1020 = vpack.c.b16 %v1003, %v1002
        %v1021 = vpack.c.b16 %v1005, %v1004
        %1038 = vmatprep.subr.bf16.mxu0 0
        %1039 = vmatpush1.bf16.msra.mxu0 %v1006
        %1040 = vmatprep.subr.bf16.mxu0 0
        %1041 = vmatpush1.bf16.msra.mxu0 %v1007
        %1042 = vmatprep.subr.bf16.mxu0 0
        %1043 = vmatpush1.bf16.msra.mxu0 %v1008
        %1044 = vmatprep.subr.bf16.mxu0 0
        %1045 = vmatpush1.bf16.msra.mxu0 %v1009
        %1046 = vmatprep.subr.bf16.mxu0 0
        %1047 = vmatpush1.bf16.msra.mxu0 %v1010
        %1048 = vmatprep.subr.bf16.mxu0 0
        %1049 = vmatpush1.bf16.msra.mxu0 %v1011
        %1050 = vmatprep.subr.bf16.mxu0 0
        %1051 = vmatpush1.bf16.msra.mxu0 %v1012
        %1052 = vmatprep.subr.bf16.mxu0 0
        %1053 = vmatpush1.bf16.msra.mxu0 %v1013
        %1054 = vmatprep.subr.bf16.mxu0 0
        %1055 = vmatpush1.bf16.msra.mxu0 %v1014
        %1056 = vmatprep.subr.bf16.mxu0 0
        %1057 = vmatpush1.bf16.msra.mxu0 %v1015
        %1058 = vmatprep.subr.bf16.mxu0 0
        %1059 = vmatpush1.bf16.msra.mxu0 %v1016
        %1060 = vmatprep.subr.bf16.mxu0 0
        %1061 = vmatpush1.bf16.msra.mxu0 %v1017
        %1062 = vmatprep.subr.bf16.mxu0 0
        %1063 = vmatpush1.bf16.msra.mxu0 %v1018
        %1064 = vmatprep.subr.bf16.mxu0 0
        %1065 = vmatpush1.bf16.msra.mxu0 %v1019
        %1066 = vmatprep.subr.bf16.mxu0 0
        %1067 = vmatpush1.bf16.msra.mxu0 %v1020
        %1068 = vmatprep.subr.bf16.mxu0 0
        %1069 = vmatpush1.bf16.msra.mxu0 %v1021
        %1070 = vmatprep.mubr.bf16.mxu0 %v902
        %1071 = vmatmul.mubr.bf16.gmra.mrb[0].mxu0 %v901
        %v1072 = vpop.f32.mrb[0].mxu0
        %v1073 = vadd.f32 %v940, %v1072
        %v1074 = vpop.f32.mrb[0].mxu0
        %v1075 = vpop.f32.mrb[0].mxu0
        %v1076 = vpop.f32.mrb[0].mxu0
        %1077 = vdwg.mxu0
        %v1078 = vmax.f32 %v1073, 0.0
        %v1079 = vpack.c.bf16 %v1078, %v1078
        %v1080 = vld [vmem:[#allocation8] sm:$0xf]
        %v1081 = vld [vmem:[#allocation8 + $0x4] sm:$0xf]
        %v1082 = vld [vmem:[#allocation8 + $0x8] sm:$0xf]
        %v1083 = vld [vmem:[#allocation8 + $0xc] sm:$0xf]
        %v1084 = vld [vmem:[#allocation8 + $0x10] sm:$0xf]
        %v1085 = vld [vmem:[#allocation8 + $0x14] sm:$0xf]
        %v1086 = vld [vmem:[#allocation8 + $0x18] sm:$0xf]
        %v1087 = vld [vmem:[#allocation8 + $0x1c] sm:$0xf]
        %v1088 = vld [vmem:[#allocation8 + $0x20] sm:$0xf]
        %v1089 = vld [vmem:[#allocation8 + $0x24] sm:$0xf]
        %v1090 = vld [vmem:[#allocation8 + $0x28] sm:$0xf]
        %v1091 = vld [vmem:[#allocation8 + $0x2c] sm:$0xf]
        %v1092 = vld [vmem:[#allocation8 + $0x30] sm:$0xf]
        %v1093 = vld [vmem:[#allocation8 + $0x34] sm:$0xf]
        %v1094 = vld [vmem:[#allocation8 + $0x38] sm:$0xf]
        %v1095 = vld [vmem:[#allocation8 + $0x3c] sm:$0xf]
        %v1096 = vld [vmem:[%s12] sm:$0x1]
        %v1098 = vlaneseq
        %v1099 = vshrl.u32 %v1098, 7
        %v1100 = vsub.s32 0, %v1099
        %v1101 = vrot.slane %v1096, %v1100
        %v1119 = vunpack.c.l.b16 %v1080
        %v1120 = vunpack.c.l.b16 %v1081
        %v1121 = vunpack.c.l.b16 %v1082
        %v1122 = vunpack.c.l.b16 %v1083
        %v1123 = vunpack.c.l.b16 %v1084
        %v1124 = vunpack.c.l.b16 %v1085
        %v1125 = vunpack.c.l.b16 %v1086
        %v1126 = vunpack.c.l.b16 %v1087
        %v1127 = vunpack.c.l.b16 %v1088
        %v1128 = vunpack.c.l.b16 %v1089
        %v1129 = vunpack.c.l.b16 %v1090
        %v1130 = vunpack.c.l.b16 %v1091
        %v1131 = vunpack.c.l.b16 %v1092
        %v1132 = vunpack.c.l.b16 %v1093
        %v1133 = vunpack.c.l.b16 %v1094
        %v1134 = vunpack.c.l.b16 %v1095
        %v1135 = vpack.c.b16 %v1120, %v1119
        %v1136 = vpack.c.b16 %v1122, %v1121
        %v1137 = vpack.c.b16 %v1124, %v1123
        %v1138 = vpack.c.b16 %v1126, %v1125
        %v1139 = vpack.c.b16 %v1128, %v1127
        %v1140 = vpack.c.b16 %v1130, %v1129
        %v1141 = vpack.c.b16 %v1132, %v1131
        %v1142 = vpack.c.b16 %v1134, %v1133
        %1151 = vmatprep.subr.bf16.mxu0 0
        %1152 = vmatpush1.bf16.msra.mxu0 %v1135
        %1153 = vmatprep.subr.bf16.mxu0 0
        %1154 = vmatpush1.bf16.msra.mxu0 %v1136
        %1155 = vmatprep.subr.bf16.mxu0 0
        %1156 = vmatpush1.bf16.msra.mxu0 %v1137
        %1157 = vmatprep.subr.bf16.mxu0 0
        %1158 = vmatpush1.bf16.msra.mxu0 %v1138
        %1159 = vmatprep.subr.bf16.mxu0 0
        %1160 = vmatpush1.bf16.msra.mxu0 %v1139
        %1161 = vmatprep.subr.bf16.mxu0 0
        %1162 = vmatpush1.bf16.msra.mxu0 %v1140
        %1163 = vmatprep.subr.bf16.mxu0 0
        %1164 = vmatpush1.bf16.msra.mxu0 %v1141
        %1165 = vmatprep.subr.bf16.mxu0 0
        %1166 = vmatpush1.bf16.msra.mxu0 %v1142
        %1167 = vmatprep.subr.bf16.mxu0 0
        %1168 = vmatpush1.bf16.msra.mxu0 0
        %1169 = vmatprep.subr.bf16.mxu0 0
        %1170 = vmatpush1.bf16.msra.mxu0 0
        %1171 = vmatprep.subr.bf16.mxu0 0
        %1172 = vmatpush1.bf16.msra.mxu0 0
        %1173 = vmatprep.subr.bf16.mxu0 0
        %1174 = vmatpush1.bf16.msra.mxu0 0
        %1175 = vmatprep.subr.bf16.mxu0 0
        %1176 = vmatpush1.bf16.msra.mxu0 0
        %1177 = vmatprep.subr.bf16.mxu0 0
        %1178 = vmatpush1.bf16.msra.mxu0 0
        %1179 = vmatprep.subr.bf16.mxu0 0
        %1180 = vmatpush1.bf16.msra.mxu0 0
        %1181 = vmatprep.subr.bf16.mxu0 0
        %1182 = vmatpush1.bf16.msra.mxu0 0
        %1183 = vmatprep.mubr.bf16.mxu0 0
        %1184 = vmatmul.mubr.bf16.gmra.mrb[0].mxu0 %v1079
        %v1185 = vpop.f32.mrb[0].mxu0
        %v1186 = vadd.f32 %v1101, %v1185
        %v1187 = vpop.f32.mrb[0].mxu0
        %v1188 = vpop.f32.mrb[0].mxu0
        %v1189 = vpop.f32.mrb[0].mxu0
        %1190 = vdwg.mxu0
        %1191 = vst [vmem:[%s505] sm:$0xff] %v1186
        %s1192 = sand.u32 %s321, 1
        %s1193 = scalar_lea.sflag [#allocation4], %s1192
        %s1194 = sand.u32 %s321, 1
        %s1195 = smul.addr %s1194, 8
        %s1196 = scalar_lea.vmem [#allocation10], %s1195
        // Predicated region
        $region89: #{tpu_custom_call.1} parent=71 // pred_check
          %p1197 = pneg %p331
        $region90: #{tpu_custom_call.1} parent=71 // pred_check_branch
          %1199 = sbr.rel (%p1197) target = $region92
        $region91: #{tpu_custom_call.1} parent=71 // pred_region
          %s1201 = ssub.s32 128, 128
          %1202 = vsyncadd %s1193, %s1201
          %s1203 = smul.addr %s30, 128
          %s1204 = scalar_lea.hbm %s13, %s1203
          %s1206 = sshll.u32 %s1196, 4
          %s1207 = int_to_ptr.vmem [resolvable:$true] %s1206
          %1209 = dma.vmem_to_hbm [thread:$0]  %s1207, 128, %s1204, %s1193
        $region92: #{tpu_custom_call.1} parent=71 // pred_fallthru
          _
      $region72: #{tpu_custom_call.1} parent=5 // pred_fallthru
        _
      %p1210 = scmp.le.s32.totalorder 2, %s25
      // Predicated region
      $region93: #{tpu_custom_call.1} parent=5 // pred_check
        %p1211 = pneg %p1210
      $region94: #{tpu_custom_call.1} parent=5 // pred_check_branch
        %1213 = sbr.rel (%p1211) target = $region96
      $region95: #{tpu_custom_call.1} parent=5 // pred_region
        %s1214 = ssub.s32 %s25, 2
        // Predicated region
        $region97: #{tpu_custom_call.1} parent=95 // pred_check
          %p1215 = pneg %p337
        $region98: #{tpu_custom_call.1} parent=95 // pred_check_branch
          %1217 = sbr.rel (%p1215) target = $region100
        $region99: #{tpu_custom_call.1} parent=95 // pred_region
          %s1218 = sand.u32 %s322, 1
          %s1219 = scalar_lea.sflag [#allocation4], %s1218
          %s1220 = sand.u32 %s322, 1
          %s1221 = smul.addr %s1220, 8
          %s1222 = scalar_lea.vmem [#allocation10], %s1221
          %1223 = dma.done %s1219, 128
        $region100: #{tpu_custom_call.1} parent=95 // pred_fallthru
          _
      $region96: #{tpu_custom_call.1} parent=5 // pred_fallthru
        _
    $region6: #{tpu_custom_call.1} parent=1 // loop_footer
      %s29 = sadd.s32 1, %s25
    $region7: #{tpu_custom_call.1} parent=1 // loop_footer_branch
      %24 = sbr.rel target = $region3
    $region8: #{tpu_custom_call.1} parent=1 // loop_exit
      _
    %1224 = vsyncpa [#allocation3], 1
    %s1225 = scalar_lea.sflag [#allocation3], 1
    %1226 = vsyncpa %s1225, 1
    %1227 = vsyncpa [#allocation6], 1
    %1228 = vsyncpa [#allocation9], 1
    %1229 = vsyncpa [#allocation4], 1
    %s1230 = scalar_lea.sflag [#allocation4], 1
    %1231 = vsyncpa %s1230, 1

</llo_original>
